<compile_context>
chip_gen: v5e
topology: v5e:2x2
jax: 0.10.0
libtpu: 0.0.40
codegen_flags: <defaults>
</compile_context>

<pallas_src>
import functools

import jax
import jax.numpy as jnp
from jax.experimental import pallas as pl
from jax.experimental.pallas import tpu as pltpu


def _ce_kernel(x_ref, t_ref, acc_ref, *, hw):
    """One (image n, pixel-tile j) step of the cross-entropy partial sum.

    x_ref  : (1, C, TM) logits block  (pixels on lanes, channels on sublanes)
    t_ref  : (1, 1, TM) int32 target classes
    acc_ref: (1, 1, TM) float32 lane-wise accumulator, resident across the
             pixel-tile axis; reduced + averaged in the wrapper.
    """
    j = pl.program_id(1)

    @pl.when(j == 0)
    def _():
        acc_ref[...] = jnp.zeros_like(acc_ref)

    x = x_ref[...].astype(jnp.float32)          # (1, C, TM)
    t = t_ref[...]                              # (1, 1, TM) int32

    # numerically stable logsumexp over the channel (sublane) axis
    m = jnp.max(x, axis=1, keepdims=True)                                  # (1,1,TM)
    lse = m + jnp.log(jnp.sum(jnp.exp(x - m), axis=1, keepdims=True))      # (1,1,TM)

    # "gather" the target-class logit via a one-hot select over the C sublanes
    cls = jax.lax.broadcasted_iota(jnp.int32, x.shape, 1)                  # (1,C,TM)
    sel = jnp.sum(jnp.where(cls == t, x, 0.0), axis=1, keepdims=True)      # (1,1,TM)

    loss = lse - sel                                                       # (1,1,TM)

    # mask pixels past the true H*W extent (the last tile may overhang)
    tm = x.shape[-1]
    pix = j * tm + jax.lax.broadcasted_iota(jnp.int32, (1, 1, tm), 2)
    loss = jnp.where(pix < hw, loss, 0.0)

    acc_ref[...] += loss


def _choose_tile(hw, c, itemsize, target_bytes):
    """Pixel-tile width: multiple of 128 (or the full extent), sized so the
    logits block is ~target_bytes before double buffering."""
    if hw <= 128:
        return hw                                    # full extent -> legal block dim
    tm = max(128, (target_bytes // (c * itemsize)) // 128 * 128)
    hw_padded = ((hw + 127) // 128) * 128
    return min(tm, hw_padded)


def cross_entropy_loss(inputs, targets, *, target_block_bytes=2 << 20):
    """inputs: (N, C, H, W) float; targets: (N, H, W) int. Returns scalar f32."""
    N, C, H, W = inputs.shape
    HW = H * W
    R = N * HW

    # free reshapes only -- no transpose, native NCHW layout, pixels on lanes
    x3 = inputs.reshape(N, C, HW)
    t3 = targets.reshape(N, 1, HW).astype(jnp.int32)

    itemsize = inputs.dtype.itemsize
    tm = _choose_tile(HW, C, itemsize, target_block_bytes)
    num_tiles = pl.cdiv(HW, tm)

    x_block_bytes = C * tm * itemsize
    # TODO(synk): for vocab-scale C (block won't fit v7x 64 MiB VMEM), add a
    # channel grid axis with an online logsumexp instead of a full (C, TM) block.

    cost = pl.CostEstimate(
        flops=int(6 * R * C),
        transcendentals=int(R * (C + 1)),          # exp per (pixel, class) + log per pixel
        bytes_accessed=int(R * C * itemsize + R * 4 + N * tm * 4),
    )

    kernel = functools.partial(_ce_kernel, hw=HW)

    partial = pl.pallas_call(
        kernel,
        out_shape=jax.ShapeDtypeStruct((N, 1, tm), jnp.float32),
        grid_spec=pltpu.PrefetchScalarGridSpec(
            num_scalar_prefetch=0,
            grid=(N, num_tiles),
            in_specs=[
                pl.BlockSpec((1, C, tm), lambda n, j: (n, 0, j)),
                pl.BlockSpec((1, 1, tm), lambda n, j: (n, 0, j)),
            ],
            out_specs=pl.BlockSpec((1, 1, tm), lambda n, j: (n, 0, 0)),
        ),
        compiler_params=pltpu.CompilerParams(
            # batch axis independent (megacore on v7x); pixel-tile axis carries
            # the resident accumulator -> arbitrary.
            dimension_semantics=("parallel", "arbitrary"),
            vmem_limit_bytes=int(min(128 << 20, max(32 << 20, 6 * x_block_bytes))),
        ),
        cost_estimate=cost,
    )(x3, t3)

    # size_average=True -> mean over all pixels (weight=None, no ignore_index)
    return jnp.sum(partial, dtype=jnp.float32) / jnp.float32(R)


def _reference(inputs, targets):
    # pure-JAX reference: F.log_softmax over dim=1 + NLLLoss2d(mean)
    logp = jax.nn.log_softmax(inputs.astype(jnp.float32), axis=1)   # (N, C, H, W)
    nll = -jnp.take_along_axis(logp, targets[:, None, :, :].astype(jnp.int32), axis=1)
    return jnp.mean(nll)


if __name__ == "__main__":
    key = jax.random.PRNGKey(0)
    k1, k2 = jax.random.split(key)

    N, C, H, W = 2, 4, 16, 16
    inputs = jax.random.normal(k1, (N, C, H, W), dtype=jnp.float32)
    targets = jax.random.randint(k2, (N, H, W), 0, C, dtype=jnp.int32)

    loss = cross_entropy_loss(inputs, targets)
    loss = jax.block_until_ready(loss)

    ref = _reference(inputs, targets)
    assert jnp.allclose(loss, ref, atol=1e-5, rtol=1e-5), (loss, ref)

    print("KERNEL_OK")
</pallas_src>

<mosaic_0001>
module attributes {stable_mosaic.version = 11 : i64} {
  func.func @_ce_kernel(%arg0: i32, %arg1: i32, %arg2: memref<1x4x256xf32, #tpu.memory_space<vmem>>, %arg3: memref<1x1x256xi32, #tpu.memory_space<vmem>>, %arg4: memref<1x1x256xf32, #tpu.memory_space<vmem>>) attributes {dimension_semantics = [#tpu.dimension_semantics<parallel>, #tpu.dimension_semantics<arbitrary>], iteration_bounds = array<i64: 2, 1>, scalar_prefetch = 0 : i64, scratch_operands = 0 : i64, tpu.core_type = #tpu.core_type<tc>, window_params = [{transform_indices = @transform_0, window_bounds = array<i64: 1, 4, 256>}, {transform_indices = @transform_1, window_bounds = array<i64: 1, 1, 256>}, {transform_indices = @transform_2, window_bounds = array<i64: 1, 1, 256>}]} {
    %c0_i32 = arith.constant 0 : i32
    %0 = arith.cmpi eq, %arg1, %c0_i32 : i32
    %1 = arith.extui %0 : i1 to i32
    %c0_i32_0 = arith.constant 0 : i32
    %2 = arith.cmpi ne, %1, %c0_i32_0 : i32
    scf.if %2 {
      %cst_17 = arith.constant 0.000000e+00 : f32
      %33 = vector.broadcast %cst_17 : f32 to vector<1x1x256xf32>
      %c0_18 = arith.constant 0 : index
      %c0_19 = arith.constant 0 : index
      %c0_20 = arith.constant 0 : index
      %34 = vector.load %arg4[%c0_18, %c0_19, %c0_20] : memref<1x1x256xf32, #tpu.memory_space<vmem>>, vector<1x1x256xf32>
      tpu.vector_store %arg4[%c0_18, %c0_19, %c0_20], %33 {strides = array<i32>} : memref<1x1x256xf32, #tpu.memory_space<vmem>>, vector<1x1x256xf32>,
    } else {
    }
    %c0 = arith.constant 0 : index
    %c0_1 = arith.constant 0 : index
    %c0_2 = arith.constant 0 : index
    %3 = vector.load %arg2[%c0, %c0_1, %c0_2] : memref<1x4x256xf32, #tpu.memory_space<vmem>>, vector<1x4x256xf32>
    %c0_3 = arith.constant 0 : index
    %c0_4 = arith.constant 0 : index
    %c0_5 = arith.constant 0 : index
    %4 = vector.load %arg3[%c0_3, %c0_4, %c0_5] : memref<1x1x256xi32, #tpu.memory_space<vmem>>, vector<1x1x256xi32>
    %cst = arith.constant dense<0xFF800000> : vector<1x256xf32>
    %5 = vector.multi_reduction <maximumf>, %3, %cst [1] : vector<1x4x256xf32> to vector<1x256xf32>
    %6 = vector.shape_cast %5 : vector<1x256xf32> to vector<1x1x256xf32>
    %7 = vector.broadcast %6 : vector<1x1x256xf32> to vector<1x4x256xf32>
    %8 = arith.subf %3, %7 : vector<1x4x256xf32>
    %9 = math.exp %8 : vector<1x4x256xf32>
    %cst_6 = arith.constant dense<0.000000e+00> : vector<1x256xf32>
    %10 = vector.multi_reduction <add>, %9, %cst_6 [1] : vector<1x4x256xf32> to vector<1x256xf32>
    %11 = vector.shape_cast %10 : vector<1x256xf32> to vector<1x1x256xf32>
    %12 = math.log %11 : vector<1x1x256xf32>
    %13 = arith.addf %6, %12 : vector<1x1x256xf32>
    %14 = tpu.iota {dimensions = array<i32: 1>} : vector<1x4x256xi32>
    %15 = vector.broadcast %4 : vector<1x1x256xi32> to vector<1x4x256xi32>
    %16 = arith.cmpi eq, %14, %15 : vector<1x4x256xi32>
    %cst_7 = arith.constant 0.000000e+00 : f32
    %17 = vector.broadcast %cst_7 : f32 to vector<1x4x256xf32>
    %18 = arith.select %16, %3, %17 : vector<1x4x256xi1>, vector<1x4x256xf32>
    %cst_8 = arith.constant dense<0.000000e+00> : vector<1x256xf32>
    %19 = vector.multi_reduction <add>, %18, %cst_8 [1] : vector<1x4x256xf32> to vector<1x256xf32>
    %20 = vector.shape_cast %19 : vector<1x256xf32> to vector<1x1x256xf32>
    %21 = arith.subf %13, %20 : vector<1x1x256xf32>
    %c256_i32 = arith.constant 256 : i32
    %22 = arith.muli %arg1, %c256_i32 : i32
    %23 = tpu.iota {dimensions = array<i32: 2>} : vector<1x1x256xi32>
    %24 = vector.broadcast %22 : i32 to vector<1x1x256xi32>
    %25 = arith.addi %24, %23 : vector<1x1x256xi32>
    %c256_i32_9 = arith.constant 256 : i32
    %26 = vector.broadcast %c256_i32_9 : i32 to vector<1x1x256xi32>
    %27 = arith.cmpi slt, %25, %26 : vector<1x1x256xi32>
    %cst_10 = arith.constant 0.000000e+00 : f32
    %28 = vector.broadcast %cst_10 : f32 to vector<1x1x256xf32>
    %29 = arith.select %27, %21, %28 : vector<1x1x256xi1>, vector<1x1x256xf32>
    %c0_11 = arith.constant 0 : index
    %c0_12 = arith.constant 0 : index
    %c0_13 = arith.constant 0 : index
    %30 = vector.load %arg4[%c0_11, %c0_12, %c0_13] : memref<1x1x256xf32, #tpu.memory_space<vmem>>, vector<1x1x256xf32>
    %31 = arith.addf %30, %29 : vector<1x1x256xf32>
    %c0_14 = arith.constant 0 : index
    %c0_15 = arith.constant 0 : index
    %c0_16 = arith.constant 0 : index
    %32 = vector.load %arg4[%c0_14, %c0_15, %c0_16] : memref<1x1x256xf32, #tpu.memory_space<vmem>>, vector<1x1x256xf32>
    tpu.vector_store %arg4[%c0_14, %c0_15, %c0_16], %31 {strides = array<i32>} : memref<1x1x256xf32, #tpu.memory_space<vmem>>, vector<1x1x256xf32>,
    return
  }
  func.func @transform_0(%arg0: i32, %arg1: i32) -> (i32, i32, i32) {
    %c0_i32 = arith.constant 0 : i32
    %c0_i32_0 = arith.constant 0 : i32
    return %arg0, %c0_i32, %arg1 : i32, i32, i32
  }
  func.func @transform_1(%arg0: i32, %arg1: i32) -> (i32, i32, i32) {
    %c0_i32 = arith.constant 0 : i32
    %c0_i32_0 = arith.constant 0 : i32
    return %arg0, %c0_i32, %arg1 : i32, i32, i32
  }
  func.func @transform_2(%arg0: i32, %arg1: i32) -> (i32, i32, i32) {
    %c0_i32 = arith.constant 0 : i32
    %c0_i32_0 = arith.constant 0 : i32
    %c0_i32_1 = arith.constant 0 : i32
    return %arg0, %c0_i32, %c0_i32_0 : i32, i32, i32
  }
}

</mosaic_0001>

<llo_original>
// kernel: tpu_custom_call.1
$region0: #{tpu_custom_call.1}
  #allocation0 [shape = 'u32[]', space=smem, size = 0x4, offset = 0x4, fixed_abs, tag = 'smem constant byte address 0x4 - core index']
  #allocation1 [shape = 'u32[72,128]{1,0:T(1,128)}', space=vmem, size = 0x9000, scoped, tag = 'internal scratch']
  %s0 = inlined_call_operand.hbm [shape: f32[2,4,256], index: 0, kind: input, shape index: {}]
  %s1 = inlined_call_operand.hbm [shape: s32[2,1,256], index: 1, kind: input, shape index: {}]
  %s2 = inlined_call_operand.hbm [shape: f32[2,1,256], index: 2, kind: output, shape index: {}]
  %s3 = sld [smem:[#allocation0]]
  $region53: #{tpu_custom_call.1} parent=0
    _
  %s5 = ssub.s32 1, %s3
  %s6 = scalar_select 0, %s5, %s3
  $region1: #{tpu_custom_call.1} parent=0
    #allocation2 [shape = 'u8[8192]{0}', space=vmem, size = 0x2000, scoped, tag = 'input window, operand 0']
    #allocation3 [shape = 's32[2]{0}', space=sflag, size = 0x8, scoped, tag = 'scoped memory for tpu_custom_call.1']
    #allocation4 [shape = 's32[2]{0}', space=sflag, size = 0x8, scoped, tag = 'scoped memory for tpu_custom_call.1']
    #allocation5 [shape = 'u8[2048]{0}', space=vmem, size = 0x800, scoped, tag = 'input window, operand 1']
    #allocation6 [shape = 's32[2]{0}', space=sflag, size = 0x8, scoped, tag = 'scoped memory for tpu_custom_call.1']
    #allocation7 [shape = 'u8[2048]{0}', space=vmem, size = 0x800, scoped, tag = 'output window, operand 0']
    %7 = vsyncpa [#allocation3], 0
    %s8 = scalar_lea.sflag [#allocation3], 1
    %9 = vsyncpa %s8, 0
    %10 = vsyncpa [#allocation6], 0
    %s11 = scalar_lea.sflag [#allocation6], 1
    %12 = vsyncpa %s11, 0
    %13 = vsyncpa [#allocation4], 0
    %s14 = scalar_lea.sflag [#allocation4], 1
    %15 = vsyncpa %s14, 0
    loop: start=0, step=1, limit=4
    $region2: #{tpu_custom_call.1} parent=1 // loop_pre_header
      _
    $region3: #{tpu_custom_call.1} parent=1 // loop_header
      %s17 = sphi 0, %s21
      %p18 = scmp.ge.s32.totalorder %s17, 4
      %s24 = sphi 0, %s36
      %s25 = sphi 0, %s32
      %s26 = sphi 0, %s24
      %s27 = sphi 0, %s25
      %s28 = sphi 0, %s26
      %s29 = sphi 0, %s27
      %s41 = sphi 0, %s43
      %s44 = sphi 0, %s41
      %s45 = sphi 0, %s44
      %s61 = sphi 0, %s45
      %s69 = sphi 0, %s71
      %s72 = sphi 0, %s69
      %s73 = sphi 0, %s72
      %s89 = sphi 0, %s73
      %s95 = sphi 0, %s97
      %s98 = sphi 0, %s95
      %s99 = sphi 0, %s98
      %s115 = sphi 0, %s99
    $region4: #{tpu_custom_call.1} parent=1 // loop_header_branch
      %20 = sbr.rel (%p18) target = $region8
    $region5: #{tpu_custom_call.1} parent=1 // loop_body
      %s22 = ssub.s32 %s17, 1
      %s23 = ssub.s32 %s17, 2
      %s30 = sadd.s32 1, %s25
      %p31 = scmp.ge.s32.totalorder %s30, 1
      %s32 = scalar_select %p31, 0, %s30
      %s33 = sadd.s32 1, %s24
      %s34 = scalar_select %p31, %s33, %s24
      %p35 = scmp.ge.s32.totalorder %s34, 2
      %s36 = scalar_select %p35, 0, %s34
      %s37 = ssub.s32 %s24, %s36
      %s38 = ssub.s32 %s25, %s32
      %s39 = sor.u32 %s37, %s38
      %p40 = scmp.eq.s32.totalorder %s39, 0
      %s42 = sadd.s32 %s41, 1
      %s43 = scalar_select %p40, %s41, %s42
      %p46 = pneg %p40
      %p47 = scmp.eq.s32.totalorder %s17, 1
      %p48 = por %p46, %p47
      %p49 = scmp.ne.s32.totalorder %s41, %s44
      %p50 = scmp.eq.s32.totalorder %s17, 0
      %p51 = por %p49, %p50
      %p52 = scmp.ne.s32.totalorder %s41, %s44
      %p53 = scmp.eq.s32.totalorder %s22, 1
      %p54 = por %p52, %p53
      %p55 = scmp.ne.s32.totalorder %s44, %s45
      %p56 = scmp.eq.s32.totalorder %s22, 0
      %p57 = por %p55, %p56
      %p58 = scmp.ne.s32.totalorder %s44, %s45
      %p59 = scmp.eq.s32.totalorder %s23, 1
      %p60 = por %p58, %p59
      %p62 = scmp.ne.s32.totalorder %s45, %s61
      %p63 = scmp.eq.s32.totalorder %s23, 0
      %p64 = por %p62, %p63
      %s65 = ssub.s32 %s24, %s36
      %s66 = ssub.s32 %s25, %s32
      %s67 = sor.u32 %s65, %s66
      %p68 = scmp.eq.s32.totalorder %s67, 0
      %s70 = sadd.s32 %s69, 1
      %s71 = scalar_select %p68, %s69, %s70
      %p74 = pneg %p68
      %p75 = scmp.eq.s32.totalorder %s17, 1
      %p76 = por %p74, %p75
      %p77 = scmp.ne.s32.totalorder %s69, %s72
      %p78 = scmp.eq.s32.totalorder %s17, 0
      %p79 = por %p77, %p78
      %p80 = scmp.ne.s32.totalorder %s69, %s72
      %p81 = scmp.eq.s32.totalorder %s22, 1
      %p82 = por %p80, %p81
      %p83 = scmp.ne.s32.totalorder %s72, %s73
      %p84 = scmp.eq.s32.totalorder %s22, 0
      %p85 = por %p83, %p84
      %p86 = scmp.ne.s32.totalorder %s72, %s73
      %p87 = scmp.eq.s32.totalorder %s23, 1
      %p88 = por %p86, %p87
      %p90 = scmp.ne.s32.totalorder %s73, %s89
      %p91 = scmp.eq.s32.totalorder %s23, 0
      %p92 = por %p90, %p91
      %s93 = ssub.s32 %s24, %s36
      %p94 = scmp.eq.s32.totalorder %s93, 0
      %s96 = sadd.s32 %s95, 1
      %s97 = scalar_select %p94, %s95, %s96
      %p100 = pneg %p94
      %p101 = scmp.eq.s32.totalorder %s17, 1
      %p102 = por %p100, %p101
      %p103 = scmp.ne.s32.totalorder %s95, %s98
      %p104 = scmp.eq.s32.totalorder %s17, 0
      %p105 = por %p103, %p104
      %p106 = scmp.ne.s32.totalorder %s95, %s98
      %p107 = scmp.eq.s32.totalorder %s22, 1
      %p108 = por %p106, %p107
      %p109 = scmp.ne.s32.totalorder %s98, %s99
      %p110 = scmp.eq.s32.totalorder %s22, 0
      %p111 = por %p109, %p110
      %p112 = scmp.ne.s32.totalorder %s98, %s99
      %p113 = scmp.eq.s32.totalorder %s23, 1
      %p114 = por %p112, %p113
      %p116 = scmp.ne.s32.totalorder %s99, %s115
      %p117 = scmp.eq.s32.totalorder %s23, 0
      %p118 = por %p116, %p117
      %p119 = scmp.le.s32.totalorder 1, %s17
      %p120 = scmp.lt.s32.totalorder %s17, 3
      %p121 = pnand %p119, %p120
      %p122 = pneg %p121
      // Predicated region
      $region9: #{tpu_custom_call.1} parent=5 // pred_check
        _
      $region10: #{tpu_custom_call.1} parent=5 // pred_check_branch
        %124 = sbr.rel (%p121) target = $region12
      $region11: #{tpu_custom_call.1} parent=5 // pred_region
        %s125 = ssub.s32 %s17, 1
      $region12: #{tpu_custom_call.1} parent=5 // pred_fallthru
        _
      %p126 = scmp.lt.s32.totalorder %s17, 2
      // Predicated region
      $region13: #{tpu_custom_call.1} parent=5 // pred_check
        %p127 = pneg %p126
      $region14: #{tpu_custom_call.1} parent=5 // pred_check_branch
        %129 = sbr.rel (%p127) target = $region16
      $region15: #{tpu_custom_call.1} parent=5 // pred_region
        // Predicated region
        $region17: #{tpu_custom_call.1} parent=15 // pred_check
          %p130 = pneg %p51
        $region18: #{tpu_custom_call.1} parent=15 // pred_check_branch
          %132 = sbr.rel (%p130) target = $region20
        $region19: #{tpu_custom_call.1} parent=15 // pred_region
          %s133 = sand.u32 %s41, 1
          %s134 = scalar_lea.sflag [#allocation3], %s133
          %s135 = sand.u32 %s41, 1
          %s136 = smul.addr %s135, 8
          %s137 = scalar_lea.vmem [#allocation2], %s136
          %s138 = smul.u32 2, %s25
          %140 = vsyncadd %s134, 0
          %s141 = smul.addr %s24, 2
          %s142 = sadd.s32 %s138, %s141
          %s143 = smul.addr %s142, 4
          %s144 = scalar_lea.hbm %s0, %s143
          %s146 = sshll.u32 %s144, 4
          %s147 = int_to_ptr.hbm [resolvable:$true] %s146
          %s148 = sshll.u32 %s137, 4
          %s149 = int_to_ptr.vmem [resolvable:$true] %s148
          %151 = dma.hbm_to_vmem [thread:$0]  %s147, 128, %s149, %s134
        $region20: #{tpu_custom_call.1} parent=15 // pred_fallthru
          _
        // Predicated region
        $region21: #{tpu_custom_call.1} parent=15 // pred_check
          %p152 = pneg %p79
        $region22: #{tpu_custom_call.1} parent=15 // pred_check_branch
          %154 = sbr.rel (%p152) target = $region24
        $region23: #{tpu_custom_call.1} parent=15 // pred_region
          %s155 = sand.u32 %s69, 1
          %s156 = scalar_lea.sflag [#allocation6], %s155
          %s157 = sand.u32 %s69, 1
          %s158 = smul.addr %s157, 2
          %s159 = scalar_lea.vmem [#allocation5], %s158
          %s160 = smul.u32 2, %s25
          %162 = vsyncadd %s156, 0
          %s163 = smul.addr %s24, 2
          %s164 = sadd.s32 %s160, %s163
          %s165 = scalar_lea.hbm %s1, %s164
          %s167 = sshll.u32 %s165, 4
          %s168 = int_to_ptr.hbm [resolvable:$true] %s167
          %s169 = sshll.u32 %s159, 4
          %s170 = int_to_ptr.vmem [resolvable:$true] %s169
          %172 = dma.hbm_to_vmem [thread:$0]  %s168, 32, %s170, %s156
        $region24: #{tpu_custom_call.1} parent=15 // pred_fallthru
          _
      $region16: #{tpu_custom_call.1} parent=5 // pred_fallthru
        _
      %p173 = scmp.le.s32.totalorder 1, %s17
      %p174 = scmp.lt.s32.totalorder %s17, 3
      %p175 = pnand %p173, %p174
      %p176 = pneg %p175
      // Predicated region
      $region25: #{tpu_custom_call.1} parent=5 // pred_check
        _
      $region26: #{tpu_custom_call.1} parent=5 // pred_check_branch
        %178 = sbr.rel (%p175) target = $region28
      $region27: #{tpu_custom_call.1} parent=5 // pred_region
        %s179 = ssub.s32 %s17, 1
        %s180 = sand.u32 %s44, 1
        %s181 = scalar_lea.sflag [#allocation3], %s180
        %s182 = sand.u32 %s44, 1
        %s183 = smul.addr %s182, 8
        %s184 = scalar_lea.vmem [#allocation2], %s183
        // Predicated region
        $region29: #{tpu_custom_call.1} parent=27 // pred_check
          %p185 = pneg %p57
        $region30: #{tpu_custom_call.1} parent=27 // pred_check_branch
          %187 = sbr.rel (%p185) target = $region32
        $region31: #{tpu_custom_call.1} parent=27 // pred_region
          %189 = dma.done %s181, 128
        $region32: #{tpu_custom_call.1} parent=27 // pred_fallthru
          _
        %s190 = sand.u32 %s72, 1
        %s191 = scalar_lea.sflag [#allocation6], %s190
        %s192 = sand.u32 %s72, 1
        %s193 = smul.addr %s192, 2
        %s194 = scalar_lea.vmem [#allocation5], %s193
        // Predicated region
        $region33: #{tpu_custom_call.1} parent=27 // pred_check
          %p195 = pneg %p85
        $region34: #{tpu_custom_call.1} parent=27 // pred_check_branch
          %197 = sbr.rel (%p195) target = $region36
        $region35: #{tpu_custom_call.1} parent=27 // pred_region
          %199 = dma.done %s191, 32
        $region36: #{tpu_custom_call.1} parent=27 // pred_fallthru
          _
        %s200 = sand.u32 %s44, 1
        %s201 = scalar_lea.sflag [#allocation3], %s200
        %s202 = sand.u32 %s44, 1
        %s203 = smul.addr %s202, 8
        %s204 = scalar_lea.vmem [#allocation2], %s203
        %p205 = pneg %p57
        %p206 = pneg %p54
        %s207 = sand.u32 %s72, 1
        %s208 = scalar_lea.sflag [#allocation6], %s207
        %s209 = sand.u32 %s72, 1
        %s210 = smul.addr %s209, 2
        %s211 = scalar_lea.vmem [#allocation5], %s210
        %p212 = pneg %p85
        %p213 = pneg %p82
        %p214 = pneg %p111
        %p215 = pneg %p108
        %s216 = sand.u32 %s98, 1
        %s217 = scalar_lea.sflag [#allocation4], %s216
        %s218 = sand.u32 %s98, 1
        %s219 = smul.addr %s218, 2
        %s220 = scalar_lea.vmem [#allocation7], %s219
        %s221 = smul.u32 2, %s27
        %s222 = smul.u32 2, %s27
        %p223 = scmp.eq.s32.totalorder %s27, 0
        // Predicated region
        $region37: #{tpu_custom_call.1} parent=27 // pred_check
          %p224 = pneg %p223
        $region38: #{tpu_custom_call.1} parent=27 // pred_check_branch
          %226 = sbr.rel (%p224) target = $region40
        $region39: #{tpu_custom_call.1} parent=27 // pred_region
          %v227 = vlaneseq
          %vm228 = vcmp.ge.s32.totalorder %v227, 0
          %vm229 = vcmp.lt.s32.totalorder %v227, 256
          %vm230 = vmand %vm228, %vm229
          %231 = vst.msk [vmem:[%s220] sm:$0x3] %vm230, 0.0
        $region40: #{tpu_custom_call.1} parent=27 // pred_fallthru
          _
        %v232 = vld [vmem:[%s184] sm:$0xff]
        %v233 = vld [vmem:[%s194] sm:$0x3]
        %235 = vst [vmem:[#allocation1] ss:$2 sm:$0xff] %v232
        %v236 = vld.sshfl [vmem:[#allocation1] sm:$0xff pattern:$0x75316420]
        %v237 = vld.sshfl [vmem:[#allocation1 + $0x8] sm:$0xff pattern:$0x75316420]
        %vm240 = vcmask 1043456
        %v241 = vsel %vm240, %v236, -inf
        %v242 = vrot.slane %v241, 4
        %v243 = vmax.f32 %v241, %v242
        %v244 = vrot.slane %v243, 2
        %v245 = vmax.f32 %v243, %v244
        %v246 = vrot.slane %v245, 1
        %v247 = vmax.f32 %v245, %v246
        %v248 = vsel %vm240, %v237, -inf
        %v249 = vrot.slane %v248, 4
        %v250 = vmax.f32 %v248, %v249
        %v251 = vrot.slane %v250, 2
        %v252 = vmax.f32 %v250, %v251
        %v253 = vrot.slane %v252, 1
        %v254 = vmax.f32 %v252, %v253
        %v257 = vrot.slane %v254, 4
        %v258 = vsel %vm240, %v247, %v257
        %v260 = vsub.f32 %v232, %v258
        %v261 = vmul.f32 %v260, 1.442695
        %v262 = vpow.pop %v261
        %264 = vst [vmem:[#allocation1] ss:$2 sm:$0xff] %v262
        %v265 = vld.sshfl [vmem:[#allocation1] sm:$0xff pattern:$0x75316420]
        %v266 = vld.sshfl [vmem:[#allocation1 + $0x8] sm:$0xff pattern:$0x75316420]
        %v269 = vsel %vm240, %v265, 0.0
        %v270 = vrot.slane %v269, 4
        %v271 = vadd.f32 %v269, %v270
        %v272 = vrot.slane %v271, 2
        %v273 = vadd.f32 %v271, %v272
        %v274 = vrot.slane %v273, 1
        %v275 = vadd.f32 %v273, %v274
        %v276 = vsel %vm240, %v266, 0.0
        %v277 = vrot.slane %v276, 4
        %v278 = vadd.f32 %v276, %v277
        %v279 = vrot.slane %v278, 2
        %v280 = vadd.f32 %v278, %v279
        %v281 = vrot.slane %v280, 1
        %v282 = vadd.f32 %v280, %v281
        %v283 = vlog2.pop %v275
        %v284 = vmul.f32 %v283, 0.6931472
        %v285 = vlog2.pop %v282
        %v286 = vmul.f32 %v285, 0.6931472
        %v287 = vadd.f32 %v247, %v284
        %v288 = vadd.f32 %v254, %v286
        %v289 = vlaneseq
        %v290 = vshrl.u32 %v289, 7
        %v291 = vperm.slane %v233, 0
        %v292 = vperm.slane %v233, 1
        %vm293 = vcmp.eq.s32.totalorder %v290, %v291
        %vm294 = vcmp.eq.s32.totalorder %v290, %v292
        %295 = vst [vmem:[#allocation1] ss:$2 sm:$0xff] %v232
        %v296 = vld.sshfl [vmem:[#allocation1] sm:$0xff pattern:$0x75316420]
        %v297 = vld.sshfl [vmem:[#allocation1 + $0x8] sm:$0xff pattern:$0x75316420]
        %v300 = vsel %vm293, %v296, 0.0
        %v301 = vsel %vm294, %v297, 0.0
        %v302 = vsel %vm240, %v300, 0.0
        %v303 = vrot.slane %v302, 4
        %v304 = vadd.f32 %v302, %v303
        %v305 = vrot.slane %v304, 2
        %v306 = vadd.f32 %v304, %v305
        %v307 = vrot.slane %v306, 1
        %v308 = vadd.f32 %v306, %v307
        %v309 = vsel %vm240, %v301, 0.0
        %v310 = vrot.slane %v309, 4
        %v311 = vadd.f32 %v309, %v310
        %v312 = vrot.slane %v311, 2
        %v313 = vadd.f32 %v311, %v312
        %v314 = vrot.slane %v313, 1
        %v315 = vadd.f32 %v313, %v314
        %v316 = vsub.f32 %v287, %v308
        %v317 = vsub.f32 %v288, %v315
        %s318 = smul.u32 %s27, 256
        %v319 = vlaneseq
        %v320 = vand.u32 %v319, 127
        %v321 = vadd.s32 %v320, 128
        %v322 = vstv %s318
        %v323 = vadd.s32 %v322, %v320
        %v324 = vadd.s32 %v322, %v321
        %vm325 = vcmp.lt.s32.totalorder %v323, 256
        %vm326 = vcmp.lt.s32.totalorder %v324, 256
        %v327 = vsel %vm325, %v316, 0.0
        %v328 = vsel %vm326, %v317, 0.0
        %v329 = vld [vmem:[%s220] sm:$0x3]
        %v332 = vrot.slane %v328, 7
        %vm333 = vcmask 1040384
        %v334 = vsel %vm333, %v327, %v332
        %v336 = vadd.f32 %v329, %v334
        %v337 = vlaneseq
        %vm338 = vcmp.ge.s32.totalorder %v337, 0
        %vm339 = vcmp.lt.s32.totalorder %v337, 256
        %vm340 = vmand %vm338, %vm339
        %341 = vst.msk [vmem:[%s220] sm:$0x3] %vm340, %v336
        %s342 = sand.u32 %s98, 1
        %s343 = scalar_lea.sflag [#allocation4], %s342
        %s344 = sand.u32 %s98, 1
        %s345 = smul.addr %s344, 2
        %s346 = scalar_lea.vmem [#allocation7], %s345
        // Predicated region
        $region41: #{tpu_custom_call.1} parent=27 // pred_check
          %p347 = pneg %p108
        $region42: #{tpu_custom_call.1} parent=27 // pred_check_branch
          %349 = sbr.rel (%p347) target = $region44
        $region43: #{tpu_custom_call.1} parent=27 // pred_region
          %351 = vsyncadd %s343, 0
          %s352 = smul.addr %s26, 2
          %s353 = scalar_lea.hbm %s2, %s352
          %s355 = sshll.u32 %s346, 4
          %s356 = int_to_ptr.vmem [resolvable:$true] %s355
          %s357 = sshll.u32 %s353, 4
          %s358 = int_to_ptr.hbm [resolvable:$true] %s357
          %360 = dma.vmem_to_hbm [thread:$0]  %s356, 32, %s358, %s343
        $region44: #{tpu_custom_call.1} parent=27 // pred_fallthru
          _
      $region28: #{tpu_custom_call.1} parent=5 // pred_fallthru
        _
      %p361 = scmp.le.s32.totalorder 2, %s17
      // Predicated region
      $region45: #{tpu_custom_call.1} parent=5 // pred_check
        %p362 = pneg %p361
      $region46: #{tpu_custom_call.1} parent=5 // pred_check_branch
        %364 = sbr.rel (%p362) target = $region48
      $region47: #{tpu_custom_call.1} parent=5 // pred_region
        %s365 = ssub.s32 %s17, 2
        // Predicated region
        $region49: #{tpu_custom_call.1} parent=47 // pred_check
          %p366 = pneg %p114
        $region50: #{tpu_custom_call.1} parent=47 // pred_check_branch
          %368 = sbr.rel (%p366) target = $region52
        $region51: #{tpu_custom_call.1} parent=47 // pred_region
          %s369 = sand.u32 %s99, 1
          %s370 = scalar_lea.sflag [#allocation4], %s369
          %s371 = sand.u32 %s99, 1
          %s372 = smul.addr %s371, 2
          %s373 = scalar_lea.vmem [#allocation7], %s372
          %375 = dma.done %s370, 32
        $region52: #{tpu_custom_call.1} parent=47 // pred_fallthru
          _
      $region48: #{tpu_custom_call.1} parent=5 // pred_fallthru
        _
    $region6: #{tpu_custom_call.1} parent=1 // loop_footer
      %s21 = sadd.s32 1, %s17
    $region7: #{tpu_custom_call.1} parent=1 // loop_footer_branch
      %16 = sbr.rel target = $region3
    $region8: #{tpu_custom_call.1} parent=1 // loop_exit
      _
    %376 = vsyncpa [#allocation3], 1
    %s377 = scalar_lea.sflag [#allocation3], 1
    %378 = vsyncpa %s377, 1
    %379 = vsyncpa [#allocation6], 1
    %s380 = scalar_lea.sflag [#allocation6], 1
    %381 = vsyncpa %s380, 1
    %382 = vsyncpa [#allocation4], 1
    %s383 = scalar_lea.sflag [#allocation4], 1
    %384 = vsyncpa %s383, 1

</llo_original>
